<compile_context>
chip_gen: v6e
topology: v6e:2x2x1
jax: 0.10.0
libtpu: 0.0.40
codegen_flags: <defaults>
</compile_context>

<pallas_src>
import jax
import jax.numpy as jnp
from jax.experimental import pallas as pl
from jax.experimental.pallas import tpu as pltpu

BN_EPS = 1e-5
_LANE = 128
_ROW_BLOCK = 256          # max epilogue row block for large batches


def _round_up(v, m):
    return (v + m - 1) // m * m


def _sublane_multiple(dtype):
    # Rows per vreg: 8 for 4-byte, 16 for 2-byte, 32 for 1-byte dtypes.
    return max(8, 32 // jnp.dtype(dtype).itemsize)


def _vmem_budget_bytes():
    """Generation-aware VMEM budget: ~75% of capacity (48 MiB on v7x, 96 MiB v5e/v6e)."""
    cap = 64 * 1024 * 1024                      # conservative fallback == v7x per-TC
    try:
        info = pltpu.get_tpu_info()
        cap = int(getattr(info, "vmem_capacity_bytes", cap)) or cap
    except Exception:
        pass
    return (3 * cap) // 4


def _pick_row_block(b_pad, sub):
    """Largest multiple of `sub` that divides b_pad and is <= _ROW_BLOCK."""
    best = sub
    m = sub
    while m <= _ROW_BLOCK:
        if b_pad % m == 0:
            best = m
        m += sub
    return best


def _make_kernel(batch_true, n_pad_rows, bn_eps, row_block):
    inv_n = 1.0 / float(batch_true)
    n_pad = float(n_pad_rows)

    def kernel(x_ref, w_ref, p_ref, o_ref):
        # x_ref: (B_pad, tk)   w_ref: (tk, tc)   p_ref: (8, tc) [row0=gamma, row1=beta]
        # o_ref: (B_pad, tc) f32 — resident across K; doubles as the accumulator.
        k = pl.program_id(1)

        @pl.when(k == 0)
        def _init():
            o_ref[...] = jnp.zeros_like(o_ref)

        o_ref[...] += jnp.dot(x_ref[...], w_ref[...],
                              preferred_element_type=jnp.float32)

        @pl.when(k == pl.num_programs(1) - 1)
        def _finalize():
            gamma = p_ref[0:1, :]
            beta = p_ref[1:2, :]
            # Stats are taken on the PRE-BIAS accumulator: zero-padded batch rows
            # contribute exactly 0, and the Linear bias cancels under train-mode BN
            # (y - E[y] is bias-free), so no row mask and no bias term are needed.
            if row_block is None:
                acc = o_ref[...]
                mean = jnp.sum(acc, axis=0, keepdims=True) * inv_n
                d = acc - mean
                # Two-pass variance; subtract the (0 - mean)^2 term of padded rows.
                ss = jnp.sum(d * d, axis=0, keepdims=True) - n_pad * (mean * mean)
                var = jnp.maximum(ss * inv_n, 0.0)
                inv_std = jax.lax.rsqrt(var + bn_eps)
                o_ref[...] = jnp.maximum(gamma * d * inv_std + beta, 0.0)
            else:
                # Large batch: row-blocked stats + in-place apply (bounded vreg use).
                n_blocks = o_ref.shape[0] // row_block
                c = o_ref.shape[1]
                zero = jnp.zeros((1, c), jnp.float32)

                def _sums(i, carry):
                    s, sq = carry
                    r = pl.multiple_of(i * row_block, row_block)
                    blk = o_ref[pl.ds(r, row_block), :]
                    return (s + jnp.sum(blk, axis=0, keepdims=True),
                            sq + jnp.sum(blk * blk, axis=0, keepdims=True))

                s, sq = jax.lax.fori_loop(0, n_blocks, _sums, (zero, zero))
                mean = s * inv_n
                var = jnp.maximum(sq * inv_n - mean * mean, 0.0)
                inv_std = jax.lax.rsqrt(var + bn_eps)
                scale = gamma * inv_std
                shift = beta - scale * mean

                def _apply(i, carry):
                    r = pl.multiple_of(i * row_block, row_block)
                    blk = o_ref[pl.ds(r, row_block), :]
                    o_ref[pl.ds(r, row_block), :] = jnp.maximum(
                        scale * blk + shift, 0.0)
                    return carry

                jax.lax.fori_loop(0, n_blocks, _apply, 0)

    return kernel


class AuxiliaryClassifierPallas:
    """Fused flatten -> Linear -> BatchNorm1d (batch stats) -> ReLU.

    `w` is the Linear weight in (in_features, num_classes) layout, i.e. the
    transpose of torch's nn.Linear.weight.  The Linear bias is accepted for API
    parity but is a mathematically exact no-op under train-mode BatchNorm.
    """

    def __init__(self, w, b, gamma, beta, *, mxu_dtype=jnp.bfloat16,
                 bn_eps=BN_EPS, max_block_k=None):
        self.F, self.C = int(w.shape[0]), int(w.shape[1])
        self.bn_eps = float(bn_eps)
        self.max_block_k = max_block_k
        self.compute_dtype = jnp.dtype(mxu_dtype)        # bf16 by default (MXU-native)
        self.C_pad = _round_up(self.C, _LANE)
        self.F_pad = _round_up(self.F, _LANE)

        # ---- static parameters padded / cast ONCE (no per-call HBM re-pad) ----
        self.w_p = (jnp.zeros((self.F_pad, self.C_pad), self.compute_dtype)
                    .at[:self.F, :self.C].set(jnp.asarray(w, self.compute_dtype)))
        # gamma / beta packed into one sublane-aligned (8, C_pad) f32 block (single
        # BlockSpec / DMA instead of three sub-tile inputs).
        params = jnp.zeros((8, self.C_pad), jnp.float32)
        params = params.at[0, :self.C].set(jnp.asarray(gamma, jnp.float32).reshape(-1))
        params = params.at[1, :self.C].set(jnp.asarray(beta, jnp.float32).reshape(-1))
        self.params_p = params
        del b  # exact no-op: BN subtracts the batch mean, which absorbs the bias
        # TODO(synk): running_mean/running_var updates of train-mode BatchNorm1d are
        #             not emitted by this kernel.

    # ---- tiling plan --------------------------------------------------------
    def _plan(self, batch):
        sub = _sublane_multiple(self.compute_dtype)
        b_pad = _round_up(batch, sub)
        row_block = None
        if b_pad > _ROW_BLOCK:
            row_block = _pick_row_block(b_pad, sub)

        tc = _LANE                      # lane-dense 128-wide C tiles (one MXU pass on v5e)
        n_c = self.C_pad // tc

        itemsize = self.compute_dtype.itemsize
        budget = _vmem_budget_bytes()
        resident = 2 * b_pad * tc * 4 + 2 * 8 * tc * 4 + (1 << 20)
        per_k = 2 * (b_pad + tc) * itemsize        # double-buffered x + w per K element
        avail = max(budget - resident, per_k * _LANE)
        tk_cap = max(_LANE, (avail // per_k) // _LANE * _LANE)
        if self.max_block_k is not None:
            tk_cap = min(tk_cap, max(_LANE, self.max_block_k // _LANE * _LANE))
        units = self.F_pad // _LANE
        cap_units = max(1, min(units, tk_cap // _LANE))
        div = 1
        for cand in range(cap_units, 0, -1):       # largest divisor of F_pad/128 that fits
            if units % cand == 0:
                div = cand
                break
        tk = div * _LANE
        n_k = units // div
        return b_pad, tc, n_c, tk, n_k, row_block

    def __call__(self, x):
        B = int(x.shape[0])
        if B < 2:
            raise ValueError("BatchNorm1d batch statistics require batch size >= 2.")
        F = 1
        for dim in x.shape[1:]:
            F *= int(dim)
        if F != self.F:
            raise ValueError(f"expected {self.F} flattened features, got {F}")

        b_pad, tc, n_c, tk, n_k, row_block = self._plan(B)
        itemsize = self.compute_dtype.itemsize

        # ---- per-call activation prep (skipped entirely when already aligned) ----
        x_flat = x.reshape(B, F)
        if x_flat.dtype != self.compute_dtype:
            x_flat = x_flat.astype(self.compute_dtype)
        if (B, F) != (b_pad, self.F_pad):
            x_p = (jnp.zeros((b_pad, self.F_pad), self.compute_dtype)
                   .at[:B, :F].set(x_flat))
        else:
            x_p = x_flat

        # ---- specs ---------------------------------------------------------------
        x_spec = pl.BlockSpec((b_pad, tk), lambda c, k: (0, k))
        w_map = lambda c, k: (k, c)
        w_spec = pl.BlockSpec((tk, tc), w_map)
        w_buffers = 2
        if n_k >= 4:
            # Long K grid (small tk, e.g. v7x VMEM cap): deepen the W pipeline.
            buffered = getattr(pl, "Buffered", None)
            if buffered is not None:
                try:
                    w_spec = pl.BlockSpec((tk, tc), w_map, pipeline_mode=buffered(3))
                    w_buffers = 3
                except TypeError:
                    pass
        p_spec = pl.BlockSpec((8, tc), lambda c, k: (0, c))
        o_spec = pl.BlockSpec((b_pad, tc), lambda c, k: (0, c))

        vmem_bytes = (2 * b_pad * tk * itemsize
                      + w_buffers * tk * tc * itemsize
                      + 2 * 8 * tc * 4
                      + 2 * b_pad * tc * 4)
        vmem_limit = int(min(_vmem_budget_bytes(),
                             max(32 * 1024 * 1024, 2 * vmem_bytes)))

        cost = pl.CostEstimate(
            flops=2 * b_pad * self.F_pad * self.C_pad,
            transcendentals=self.C_pad,
            bytes_accessed=((b_pad * self.F_pad * n_c + self.F_pad * self.C_pad)
                            * itemsize + b_pad * self.C_pad * 4),
        )

        kernel = _make_kernel(B, b_pad - B, self.bn_eps, row_block)

        out_p = pl.pallas_call(
            kernel,
            out_shape=jax.ShapeDtypeStruct((b_pad, self.C_pad), jnp.float32),
            grid_spec=pltpu.PrefetchScalarGridSpec(
                num_scalar_prefetch=0,
                grid=(n_c, n_k),
                in_specs=[x_spec, w_spec, p_spec],
                out_specs=o_spec,
            ),
            compiler_params=pltpu.CompilerParams(
                dimension_semantics=("parallel", "arbitrary"),
                vmem_limit_bytes=vmem_limit,
            ),
            cost_estimate=cost,
        )(x_p, self.w_p, self.params_p)

        return out_p[:B, :self.C]


if __name__ == "__main__":
    # Shapes implied by the module: image_size=16, patch_size=4 -> 16 patches,
    # embed_dim=32, num_classes=10, batch=2  => F = (16+1)*32 = 544.
    image_size, patch_size, embed_dim, num_classes, batch = 16, 4, 32, 10, 2
    num_patches = (image_size // patch_size) ** 2
    tokens = num_patches + 1
    feat = tokens * embed_dim

    key = jax.random.PRNGKey(0)
    kx, kw, kb, kg, kbe, kx3, kw3, kb3 = jax.random.split(key, 8)

    bound = 1.0 / (feat ** 0.5)
    w = jax.random.uniform(kw, (feat, num_classes), jnp.float32, -bound, bound)   # W^T
    b = jax.random.uniform(kb, (num_classes,), jnp.float32, -bound, bound)
    gamma = 1.0 + 0.05 * jax.random.normal(kg, (num_classes,), jnp.float32)
    beta = 0.1 * jax.random.normal(kbe, (num_classes,), jnp.float32)
    x = jax.random.normal(kx, (batch, tokens, embed_dim), jnp.float32)

    def reference(x, w, b, gamma, beta, compute_dtype):
        xf = x.reshape(x.shape[0], -1).astype(compute_dtype)
        y = jnp.dot(xf, w.astype(compute_dtype),
                    preferred_element_type=jnp.float32) + b
        m = y.mean(axis=0, keepdims=True)
        v = ((y - m) ** 2).mean(axis=0, keepdims=True)
        return jnp.maximum(gamma * (y - m) * jax.lax.rsqrt(v + BN_EPS) + beta, 0.0)

    # 1) Default path: bf16 MXU operands, single K step, single C block.
    mod = AuxiliaryClassifierPallas(w, b, gamma, beta)
    out = mod(x)
    jax.block_until_ready(out)
    ref = reference(x, w, b, gamma, beta, jnp.bfloat16)
    assert out.shape == (batch, num_classes)
    assert jnp.allclose(out, ref, atol=5e-3, rtol=5e-3), \
        float(jnp.max(jnp.abs(out - ref)))

    # 2) f32 MXU operands with a forced small K tile -> multi-step accumulation into
    #    the resident output block (and 3-deep W buffering when available).
    mod_f32 = AuxiliaryClassifierPallas(w, b, gamma, beta,
                                        mxu_dtype=jnp.float32, max_block_k=128)
    out_f32 = mod_f32(x)
    jax.block_until_ready(out_f32)
    ref_f32 = reference(x, w, b, gamma, beta, jnp.float32)
    assert jnp.allclose(out_f32, ref_f32, atol=2e-3, rtol=2e-3), \
        float(jnp.max(jnp.abs(out_f32 - ref_f32)))

    # 3) Larger batch / more classes: exercises the parallel C axis (2 C blocks) and
    #    the row-blocked BatchNorm epilogue.
    big_batch, big_classes = 600, 200
    w3 = jax.random.uniform(kw3, (feat, big_classes), jnp.float32, -bound, bound)
    b3 = jax.random.uniform(kb3, (big_classes,), jnp.float32, -bound, bound)
    g3 = jnp.ones((big_classes,), jnp.float32)
    be3 = jnp.zeros((big_classes,), jnp.float32)
    x3 = jax.random.normal(kx3, (big_batch, tokens, embed_dim), jnp.float32)
    mod3 = AuxiliaryClassifierPallas(w3, b3, g3, be3)
    out3 = mod3(x3)
    jax.block_until_ready(out3)
    ref3 = reference(x3, w3, b3, g3, be3, jnp.bfloat16)
    assert out3.shape == (big_batch, big_classes)
    assert jnp.allclose(out3, ref3, atol=5e-3, rtol=5e-3), \
        float(jnp.max(jnp.abs(out3 - ref3)))

    print("KERNEL_OK")
</pallas_src>

<mosaic_0001>
module attributes {stable_mosaic.version = 11 : i64} {
  func.func @kernel(%arg0: i32, %arg1: i32, %arg2: memref<16x640xbf16, #tpu.memory_space<vmem>>, %arg3: memref<640x128xbf16, #tpu.memory_space<vmem>>, %arg4: memref<8x128xf32, #tpu.memory_space<vmem>>, %arg5: memref<16x128xf32, #tpu.memory_space<vmem>>) attributes {dimension_semantics = [#tpu.dimension_semantics<parallel>, #tpu.dimension_semantics<arbitrary>], iteration_bounds = array<i64: 1, 1>, scalar_prefetch = 0 : i64, scratch_operands = 0 : i64, tpu.core_type = #tpu.core_type<tc>, window_params = [{transform_indices = @transform_0, window_bounds = array<i64: 16, 640>}, {transform_indices = @transform_1, window_bounds = array<i64: 640, 128>}, {transform_indices = @transform_2, window_bounds = array<i64: 8, 128>}, {transform_indices = @transform_3, window_bounds = array<i64: 16, 128>}]} {
    %c0_i32 = arith.constant 0 : i32
    %0 = arith.cmpi eq, %arg1, %c0_i32 : i32
    %1 = arith.extui %0 : i1 to i32
    %c0_i32_0 = arith.constant 0 : i32
    %2 = arith.cmpi ne, %1, %c0_i32_0 : i32
    scf.if %2 {
      %cst_10 = arith.constant 0.000000e+00 : f32
      %12 = vector.broadcast %cst_10 : f32 to vector<16x128xf32>
      %c0_11 = arith.constant 0 : index
      %c0_12 = arith.constant 0 : index
      %13 = vector.load %arg5[%c0_11, %c0_12] : memref<16x128xf32, #tpu.memory_space<vmem>>, vector<16x128xf32>
      tpu.vector_store %arg5[%c0_11, %c0_12], %12 {strides = array<i32>} : memref<16x128xf32, #tpu.memory_space<vmem>>, vector<16x128xf32>,
    } else {
    }
    %c0 = arith.constant 0 : index
    %c0_1 = arith.constant 0 : index
    %3 = vector.load %arg5[%c0, %c0_1] : memref<16x128xf32, #tpu.memory_space<vmem>>, vector<16x128xf32>
    %c0_2 = arith.constant 0 : index
    %c0_3 = arith.constant 0 : index
    %4 = vector.load %arg2[%c0_2, %c0_3] : memref<16x640xbf16, #tpu.memory_space<vmem>>, vector<16x640xbf16>
    %c0_4 = arith.constant 0 : index
    %c0_5 = arith.constant 0 : index
    %5 = vector.load %arg3[%c0_4, %c0_5] : memref<640x128xbf16, #tpu.memory_space<vmem>>, vector<640x128xbf16>
    %cst = arith.constant dense<0.000000e+00> : vector<16x128xf32>
    %6 = tpu.matmul %4, %5, %cst {dimension_numbers = #tpu.dot_dimension_numbers<[1], [0], [0], [1], [0, 0, 1, 1], [], []>} : vector<16x640xbf16>, vector<640x128xbf16>, vector<16x128xf32> -> vector<16x128xf32>
    %7 = arith.addf %3, %6 : vector<16x128xf32>
    %c0_6 = arith.constant 0 : index
    %c0_7 = arith.constant 0 : index
    %8 = vector.load %arg5[%c0_6, %c0_7] : memref<16x128xf32, #tpu.memory_space<vmem>>, vector<16x128xf32>
    tpu.vector_store %arg5[%c0_6, %c0_7], %7 {strides = array<i32>} : memref<16x128xf32, #tpu.memory_space<vmem>>, vector<16x128xf32>,
    %c0_i32_8 = arith.constant 0 : i32
    %9 = arith.cmpi eq, %arg1, %c0_i32_8 : i32
    %10 = arith.extui %9 : i1 to i32
    %c0_i32_9 = arith.constant 0 : i32
    %11 = arith.cmpi ne, %10, %c0_i32_9 : i32
    scf.if %11 {
      %c0_10 = arith.constant 0 : index
      %c0_11 = arith.constant 0 : index
      %12 = vector.load %arg4[%c0_10, %c0_11] : memref<8x128xf32, #tpu.memory_space<vmem>>, vector<1x128xf32>
      %c1 = arith.constant 1 : index
      %c0_12 = arith.constant 0 : index
      %13 = vector.load %arg4[%c1, %c0_12] : memref<8x128xf32, #tpu.memory_space<vmem>>, vector<1x128xf32>
      %c0_13 = arith.constant 0 : index
      %c0_14 = arith.constant 0 : index
      %14 = vector.load %arg5[%c0_13, %c0_14] : memref<16x128xf32, #tpu.memory_space<vmem>>, vector<16x128xf32>
      %cst_15 = arith.constant dense<0.000000e+00> : vector<128xf32>
      %15 = vector.multi_reduction <add>, %14, %cst_15 [0] : vector<16x128xf32> to vector<128xf32>
      %16 = vector.shape_cast %15 : vector<128xf32> to vector<1x128xf32>
      %cst_16 = arith.constant 5.000000e-01 : f32
      %17 = vector.broadcast %cst_16 : f32 to vector<1x128xf32>
      %18 = arith.mulf %16, %17 : vector<1x128xf32>
      %19 = vector.broadcast %18 : vector<1x128xf32> to vector<16x128xf32>
      %20 = arith.subf %14, %19 : vector<16x128xf32>
      %21 = arith.mulf %20, %20 : vector<16x128xf32>
      %cst_17 = arith.constant dense<0.000000e+00> : vector<128xf32>
      %22 = vector.multi_reduction <add>, %21, %cst_17 [0] : vector<16x128xf32> to vector<128xf32>
      %23 = vector.shape_cast %22 : vector<128xf32> to vector<1x128xf32>
      %24 = arith.mulf %18, %18 : vector<1x128xf32>
      %cst_18 = arith.constant 1.400000e+01 : f32
      %25 = vector.broadcast %cst_18 : f32 to vector<1x128xf32>
      %26 = arith.mulf %25, %24 : vector<1x128xf32>
      %27 = arith.subf %23, %26 : vector<1x128xf32>
      %cst_19 = arith.constant 5.000000e-01 : f32
      %28 = vector.broadcast %cst_19 : f32 to vector<1x128xf32>
      %29 = arith.mulf %27, %28 : vector<1x128xf32>
      %cst_20 = arith.constant 0.000000e+00 : f32
      %30 = vector.broadcast %cst_20 : f32 to vector<1x128xf32>
      %31 = arith.maximumf %29, %30 : vector<1x128xf32>
      %cst_21 = arith.constant 9.99999974E-6 : f32
      %32 = vector.broadcast %cst_21 : f32 to vector<1x128xf32>
      %33 = arith.addf %31, %32 : vector<1x128xf32>
      %34 = math.rsqrt %33 : vector<1x128xf32>
      %35 = vector.broadcast %12 : vector<1x128xf32> to vector<16x128xf32>
      %36 = arith.mulf %35, %20 : vector<16x128xf32>
      %37 = vector.broadcast %34 : vector<1x128xf32> to vector<16x128xf32>
      %38 = arith.mulf %36, %37 : vector<16x128xf32>
      %39 = vector.broadcast %13 : vector<1x128xf32> to vector<16x128xf32>
      %40 = arith.addf %38, %39 : vector<16x128xf32>
      %cst_22 = arith.constant 0.000000e+00 : f32
      %41 = vector.broadcast %cst_22 : f32 to vector<16x128xf32>
      %42 = arith.maximumf %40, %41 : vector<16x128xf32>
      %c0_23 = arith.constant 0 : index
      %c0_24 = arith.constant 0 : index
      %43 = vector.load %arg5[%c0_23, %c0_24] : memref<16x128xf32, #tpu.memory_space<vmem>>, vector<16x128xf32>
      tpu.vector_store %arg5[%c0_23, %c0_24], %42 {strides = array<i32>} : memref<16x128xf32, #tpu.memory_space<vmem>>, vector<16x128xf32>,
    } else {
    }
    return
  }
  func.func @transform_0(%arg0: i32, %arg1: i32) -> (i32, i32) {
    %c0_i32 = arith.constant 0 : i32
    %c0_i32_0 = arith.constant 0 : i32
    return %c0_i32, %arg1 : i32, i32
  }
  func.func @transform_1(%arg0: i32, %arg1: i32) -> (i32, i32) {
    %c0_i32 = arith.constant 0 : i32
    return %arg1, %arg0 : i32, i32
  }
  func.func @transform_2(%arg0: i32, %arg1: i32) -> (i32, i32) {
    %c0_i32 = arith.constant 0 : i32
    %c0_i32_0 = arith.constant 0 : i32
    return %c0_i32, %arg0 : i32, i32
  }
  func.func @transform_3(%arg0: i32, %arg1: i32) -> (i32, i32) {
    %c0_i32 = arith.constant 0 : i32
    %c0_i32_0 = arith.constant 0 : i32
    return %c0_i32, %arg0 : i32, i32
  }
}

</mosaic_0001>

<llo_original>
// kernel: tpu_custom_call.1
$region0: #{tpu_custom_call.1}
  #allocation0 [shape = 'u32[]', space=smem, size = 0x4, offset = 0x4, fixed_abs, tag = 'smem constant byte address 0x4 - core index']
  #allocation1 [shape = 'u32[144,128]{1,0:T(1,128)}', space=vmem, size = 0x12000, scoped, tag = 'internal scratch']
  %s0 = inlined_call_operand.hbm [shape: bf16[16,640], index: 0, kind: input, shape index: {}]
  %s1 = inlined_call_operand.hbm [shape: bf16[640,128], index: 1, kind: input, shape index: {}]
  %s2 = inlined_call_operand.hbm [shape: f32[8,128], index: 2, kind: input, shape index: {}]
  %s3 = inlined_call_operand.hbm [shape: f32[16,128], index: 3, kind: output, shape index: {}]
  %s4 = sld [smem:[#allocation0]]
  $region42: #{tpu_custom_call.1} parent=0
    _
  %s6 = ssub.s32 1, %s4
  %s7 = scalar_select 0, %s6, %s4
  $region1: #{tpu_custom_call.1} parent=0
    #allocation2 [shape = 'u8[20480]{0}', space=vmem, size = 0x5000, scoped, tag = 'input window, operand 0, single buffered']
    #allocation3 [shape = 's32[1]{0}', space=sflag, size = 0x4, scoped, tag = 'scoped memory for tpu_custom_call.1']
    #allocation4 [shape = 's32[1]{0}', space=sflag, size = 0x4, scoped, tag = 'scoped memory for tpu_custom_call.1']
    #allocation5 [shape = 'u8[163840]{0}', space=vmem, size = 0x28000, scoped, tag = 'input window, operand 1, single buffered']
    #allocation6 [shape = 's32[1]{0}', space=sflag, size = 0x4, scoped, tag = 'scoped memory for tpu_custom_call.1']
    #allocation7 [shape = 'u8[4096]{0}', space=vmem, size = 0x1000, scoped, tag = 'input window, operand 2, single buffered']
    #allocation8 [shape = 'u8[8192]{0}', space=vmem, size = 0x2000, scoped, tag = 'output window, operand 0, single buffered']
    %8 = vsyncpa [#allocation3], 0
    %9 = vsyncpa [#allocation6], 0
    %10 = vsyncpa [#allocation4], 0
    // Predicated region
    $region2: #{tpu_custom_call.1} parent=1 // pred_check
      _
    $region3: #{tpu_custom_call.1} parent=1 // pred_check_branch
      %12 = sbr.rel (0) target = $region5
    $region4: #{tpu_custom_call.1} parent=1 // pred_region
      %s14 = ssub.s32 640, 640
      %15 = vsyncadd [#allocation3], %s14
      %s16 = sshll.u32 [#allocation2], 4
      %s17 = int_to_ptr.vmem [resolvable:$true] %s16
      %22 = dma.hbm_to_vmem [thread:$0]  %s0, 640, %s17, [#allocation3], 320, 320, 20
    $region5: #{tpu_custom_call.1} parent=1 // pred_fallthru
      _
    // Predicated region
    $region6: #{tpu_custom_call.1} parent=1 // pred_check
      _
    $region7: #{tpu_custom_call.1} parent=1 // pred_check_branch
      %24 = sbr.rel (0) target = $region9
    $region8: #{tpu_custom_call.1} parent=1 // pred_region
      %s26 = ssub.s32 5120, 5120
      %27 = vsyncadd [#allocation6], %s26
      %s28 = sshll.u32 [#allocation5], 4
      %s29 = int_to_ptr.vmem [resolvable:$true] %s28
      %34 = dma.hbm_to_vmem [thread:$0]  %s1, 5120, %s29, [#allocation6], 64, 64, 4
    $region9: #{tpu_custom_call.1} parent=1 // pred_fallthru
      _
    // Predicated region
    $region10: #{tpu_custom_call.1} parent=1 // pred_check
      _
    $region11: #{tpu_custom_call.1} parent=1 // pred_check_branch
      %36 = sbr.rel (0) target = $region13
    $region12: #{tpu_custom_call.1} parent=1 // pred_region
      %s38 = ssub.s32 128, 128
      %39 = vsyncadd [#allocation6], %s38
      %s41 = sshll.u32 [#allocation7], 4
      %s42 = int_to_ptr.vmem [resolvable:$true] %s41
      %44 = dma.hbm_to_vmem [thread:$0]  %s2, 128, %s42, [#allocation6]
    $region13: #{tpu_custom_call.1} parent=1 // pred_fallthru
      _
    // Predicated region
    $region14: #{tpu_custom_call.1} parent=1 // pred_check
      _
    $region15: #{tpu_custom_call.1} parent=1 // pred_check_branch
      %46 = sbr.rel (0) target = $region17
    $region16: #{tpu_custom_call.1} parent=1 // pred_region
      %47 = dma.done [#allocation3], 640
    $region17: #{tpu_custom_call.1} parent=1 // pred_fallthru
      _
    // Predicated region
    $region18: #{tpu_custom_call.1} parent=1 // pred_check
      _
    $region19: #{tpu_custom_call.1} parent=1 // pred_check_branch
      %49 = sbr.rel (0) target = $region21
    $region20: #{tpu_custom_call.1} parent=1 // pred_region
      %50 = dma.done [#allocation6], 5120
    $region21: #{tpu_custom_call.1} parent=1 // pred_fallthru
      _
    // Predicated region
    $region22: #{tpu_custom_call.1} parent=1 // pred_check
      _
    $region23: #{tpu_custom_call.1} parent=1 // pred_check_branch
      %52 = sbr.rel (0) target = $region25
    $region24: #{tpu_custom_call.1} parent=1 // pred_region
      %53 = dma.done [#allocation6], 128
    $region25: #{tpu_custom_call.1} parent=1 // pred_fallthru
      _
    %p55 = scmp.eq.s32.totalorder 0, 0
    // Predicated region
    $region26: #{tpu_custom_call.1} parent=1 // pred_check
      %p56 = pneg %p55
    $region27: #{tpu_custom_call.1} parent=1 // pred_check_branch
      %58 = sbr.rel (%p56) target = $region29
    $region28: #{tpu_custom_call.1} parent=1 // pred_region
      %59 = vst [vmem:[#allocation8] sm:$0xff] 0.0
      %60 = vst [vmem:[#allocation8 + $0x8] sm:$0xff] 0.0
    $region29: #{tpu_custom_call.1} parent=1 // pred_fallthru
      _
    %v61 = vld [vmem:[#allocation8] sm:$0xff]
    %v62 = vld [vmem:[#allocation8 + $0x8] sm:$0xff]
    %v63 = vld [vmem:[#allocation2] sm:$0xff]
    %v64 = vld [vmem:[#allocation2 + $0x8] sm:$0xff]
    %v65 = vld [vmem:[#allocation2 + $0x10] sm:$0xf]
    %v66 = vld [vmem:[#allocation2 + $0x14] sm:$0xff]
    %v67 = vld [vmem:[#allocation2 + $0x1c] sm:$0xff]
    %v68 = vld [vmem:[#allocation2 + $0x24] sm:$0xf]
    %v69 = vld [vmem:[#allocation5] sm:$0xf]
    %v70 = vld [vmem:[#allocation5 + $0x4] sm:$0xf]
    %v71 = vld [vmem:[#allocation5 + $0x8] sm:$0xf]
    %v72 = vld [vmem:[#allocation5 + $0xc] sm:$0xf]
    %v73 = vld [vmem:[#allocation5 + $0x10] sm:$0xf]
    %v74 = vld [vmem:[#allocation5 + $0x14] sm:$0xf]
    %v75 = vld [vmem:[#allocation5 + $0x18] sm:$0xf]
    %v76 = vld [vmem:[#allocation5 + $0x1c] sm:$0xf]
    %v77 = vld [vmem:[#allocation5 + $0x20] sm:$0xf]
    %v78 = vld [vmem:[#allocation5 + $0x24] sm:$0xf]
    %v79 = vld [vmem:[#allocation5 + $0x28] sm:$0xf]
    %v80 = vld [vmem:[#allocation5 + $0x2c] sm:$0xf]
    %v81 = vld [vmem:[#allocation5 + $0x30] sm:$0xf]
    %v82 = vld [vmem:[#allocation5 + $0x34] sm:$0xf]
    %v83 = vld [vmem:[#allocation5 + $0x38] sm:$0xf]
    %v84 = vld [vmem:[#allocation5 + $0x3c] sm:$0xf]
    %v85 = vld [vmem:[#allocation5 + $0x40] sm:$0xf]
    %v86 = vld [vmem:[#allocation5 + $0x44] sm:$0xf]
    %v87 = vld [vmem:[#allocation5 + $0x48] sm:$0xf]
    %v88 = vld [vmem:[#allocation5 + $0x4c] sm:$0xf]
    %v89 = vld [vmem:[#allocation5 + $0x50] sm:$0xf]
    %v90 = vld [vmem:[#allocation5 + $0x54] sm:$0xf]
    %v91 = vld [vmem:[#allocation5 + $0x58] sm:$0xf]
    %v92 = vld [vmem:[#allocation5 + $0x5c] sm:$0xf]
    %v93 = vld [vmem:[#allocation5 + $0x60] sm:$0xf]
    %v94 = vld [vmem:[#allocation5 + $0x64] sm:$0xf]
    %v95 = vld [vmem:[#allocation5 + $0x68] sm:$0xf]
    %v96 = vld [vmem:[#allocation5 + $0x6c] sm:$0xf]
    %v97 = vld [vmem:[#allocation5 + $0x70] sm:$0xf]
    %v98 = vld [vmem:[#allocation5 + $0x74] sm:$0xf]
    %v99 = vld [vmem:[#allocation5 + $0x78] sm:$0xf]
    %v100 = vld [vmem:[#allocation5 + $0x7c] sm:$0xf]
    %v101 = vld [vmem:[#allocation5 + $0x80] sm:$0xf]
    %v102 = vld [vmem:[#allocation5 + $0x84] sm:$0xf]
    %v103 = vld [vmem:[#allocation5 + $0x88] sm:$0xf]
    %v104 = vld [vmem:[#allocation5 + $0x8c] sm:$0xf]
    %v105 = vld [vmem:[#allocation5 + $0x90] sm:$0xf]
    %v106 = vld [vmem:[#allocation5 + $0x94] sm:$0xf]
    %v107 = vld [vmem:[#allocation5 + $0x98] sm:$0xf]
    %v108 = vld [vmem:[#allocation5 + $0x9c] sm:$0xf]
    %v109 = vld [vmem:[#allocation5 + $0xa0] sm:$0xf]
    %v110 = vld [vmem:[#allocation5 + $0xa4] sm:$0xf]
    %v111 = vld [vmem:[#allocation5 + $0xa8] sm:$0xf]
    %v112 = vld [vmem:[#allocation5 + $0xac] sm:$0xf]
    %v113 = vld [vmem:[#allocation5 + $0xb0] sm:$0xf]
    %v114 = vld [vmem:[#allocation5 + $0xb4] sm:$0xf]
    %v115 = vld [vmem:[#allocation5 + $0xb8] sm:$0xf]
    %v116 = vld [vmem:[#allocation5 + $0xbc] sm:$0xf]
    %v117 = vld [vmem:[#allocation5 + $0xc0] sm:$0xf]
    %v118 = vld [vmem:[#allocation5 + $0xc4] sm:$0xf]
    %v119 = vld [vmem:[#allocation5 + $0xc8] sm:$0xf]
    %v120 = vld [vmem:[#allocation5 + $0xcc] sm:$0xf]
    %v121 = vld [vmem:[#allocation5 + $0xd0] sm:$0xf]
    %v122 = vld [vmem:[#allocation5 + $0xd4] sm:$0xf]
    %v123 = vld [vmem:[#allocation5 + $0xd8] sm:$0xf]
    %v124 = vld [vmem:[#allocation5 + $0xdc] sm:$0xf]
    %v125 = vld [vmem:[#allocation5 + $0xe0] sm:$0xf]
    %v126 = vld [vmem:[#allocation5 + $0xe4] sm:$0xf]
    %v127 = vld [vmem:[#allocation5 + $0xe8] sm:$0xf]
    %v128 = vld [vmem:[#allocation5 + $0xec] sm:$0xf]
    %v129 = vld [vmem:[#allocation5 + $0xf0] sm:$0xf]
    %v130 = vld [vmem:[#allocation5 + $0xf4] sm:$0xf]
    %v131 = vld [vmem:[#allocation5 + $0xf8] sm:$0xf]
    %v132 = vld [vmem:[#allocation5 + $0xfc] sm:$0xf]
    %v133 = vld [vmem:[#allocation5 + $0x100] sm:$0xf]
    %v134 = vld [vmem:[#allocation5 + $0x104] sm:$0xf]
    %v135 = vld [vmem:[#allocation5 + $0x108] sm:$0xf]
    %v136 = vld [vmem:[#allocation5 + $0x10c] sm:$0xf]
    %v137 = vld [vmem:[#allocation5 + $0x110] sm:$0xf]
    %v138 = vld [vmem:[#allocation5 + $0x114] sm:$0xf]
    %v139 = vld [vmem:[#allocation5 + $0x118] sm:$0xf]
    %v140 = vld [vmem:[#allocation5 + $0x11c] sm:$0xf]
    %v141 = vld [vmem:[#allocation5 + $0x120] sm:$0xf]
    %v142 = vld [vmem:[#allocation5 + $0x124] sm:$0xf]
    %v143 = vld [vmem:[#allocation5 + $0x128] sm:$0xf]
    %v144 = vld [vmem:[#allocation5 + $0x12c] sm:$0xf]
    %v145 = vld [vmem:[#allocation5 + $0x130] sm:$0xf]
    %v146 = vld [vmem:[#allocation5 + $0x134] sm:$0xf]
    %v147 = vld [vmem:[#allocation5 + $0x138] sm:$0xf]
    %v148 = vld [vmem:[#allocation5 + $0x13c] sm:$0xf]
    %v155 = vunpack.c.l.b16 %v63
    %v156 = vunpack.c.h.b16 %v63
    %v157 = vunpack.c.l.b16 %v64
    %v158 = vunpack.c.h.b16 %v64
    %v159 = vunpack.c.l.b16 %v65
    %v160 = vunpack.c.l.b16 %v66
    %v161 = vunpack.c.h.b16 %v66
    %v162 = vunpack.c.l.b16 %v67
    %v163 = vunpack.c.h.b16 %v67
    %v164 = vunpack.c.l.b16 %v68
    %v165 = vpack.c.b16 %v160, %v155
    %v166 = vpack.c.b16 %v161, %v156
    %v167 = vpack.c.b16 %v162, %v157
    %v168 = vpack.c.b16 %v163, %v158
    %v169 = vpack.c.b16 %v164, %v159
    %v255 = vunpack.c.l.b16 %v69
    %v256 = vunpack.c.l.b16 %v70
    %v257 = vunpack.c.l.b16 %v71
    %v258 = vunpack.c.l.b16 %v72
    %v259 = vunpack.c.l.b16 %v73
    %v260 = vunpack.c.l.b16 %v74
    %v261 = vunpack.c.l.b16 %v75
    %v262 = vunpack.c.l.b16 %v76
    %v263 = vunpack.c.l.b16 %v77
    %v264 = vunpack.c.l.b16 %v78
    %v265 = vunpack.c.l.b16 %v79
    %v266 = vunpack.c.l.b16 %v80
    %v267 = vunpack.c.l.b16 %v81
    %v268 = vunpack.c.l.b16 %v82
    %v269 = vunpack.c.l.b16 %v83
    %v270 = vunpack.c.l.b16 %v84
    %v271 = vunpack.c.l.b16 %v85
    %v272 = vunpack.c.l.b16 %v86
    %v273 = vunpack.c.l.b16 %v87
    %v274 = vunpack.c.l.b16 %v88
    %v275 = vunpack.c.l.b16 %v89
    %v276 = vunpack.c.l.b16 %v90
    %v277 = vunpack.c.l.b16 %v91
    %v278 = vunpack.c.l.b16 %v92
    %v279 = vunpack.c.l.b16 %v93
    %v280 = vunpack.c.l.b16 %v94
    %v281 = vunpack.c.l.b16 %v95
    %v282 = vunpack.c.l.b16 %v96
    %v283 = vunpack.c.l.b16 %v97
    %v284 = vunpack.c.l.b16 %v98
    %v285 = vunpack.c.l.b16 %v99
    %v286 = vunpack.c.l.b16 %v100
    %v287 = vunpack.c.l.b16 %v101
    %v288 = vunpack.c.l.b16 %v102
    %v289 = vunpack.c.l.b16 %v103
    %v290 = vunpack.c.l.b16 %v104
    %v291 = vunpack.c.l.b16 %v105
    %v292 = vunpack.c.l.b16 %v106
    %v293 = vunpack.c.l.b16 %v107
    %v294 = vunpack.c.l.b16 %v108
    %v295 = vunpack.c.l.b16 %v109
    %v296 = vunpack.c.l.b16 %v110
    %v297 = vunpack.c.l.b16 %v111
    %v298 = vunpack.c.l.b16 %v112
    %v299 = vunpack.c.l.b16 %v113
    %v300 = vunpack.c.l.b16 %v114
    %v301 = vunpack.c.l.b16 %v115
    %v302 = vunpack.c.l.b16 %v116
    %v303 = vunpack.c.l.b16 %v117
    %v304 = vunpack.c.l.b16 %v118
    %v305 = vunpack.c.l.b16 %v119
    %v306 = vunpack.c.l.b16 %v120
    %v307 = vunpack.c.l.b16 %v121
    %v308 = vunpack.c.l.b16 %v122
    %v309 = vunpack.c.l.b16 %v123
    %v310 = vunpack.c.l.b16 %v124
    %v311 = vunpack.c.l.b16 %v125
    %v312 = vunpack.c.l.b16 %v126
    %v313 = vunpack.c.l.b16 %v127
    %v314 = vunpack.c.l.b16 %v128
    %v315 = vunpack.c.l.b16 %v129
    %v316 = vunpack.c.l.b16 %v130
    %v317 = vunpack.c.l.b16 %v131
    %v318 = vunpack.c.l.b16 %v132
    %v319 = vunpack.c.l.b16 %v133
    %v320 = vunpack.c.l.b16 %v134
    %v321 = vunpack.c.l.b16 %v135
    %v322 = vunpack.c.l.b16 %v136
    %v323 = vunpack.c.l.b16 %v137
    %v324 = vunpack.c.l.b16 %v138
    %v325 = vunpack.c.l.b16 %v139
    %v326 = vunpack.c.l.b16 %v140
    %v327 = vunpack.c.l.b16 %v141
    %v328 = vunpack.c.l.b16 %v142
    %v329 = vunpack.c.l.b16 %v143
    %v330 = vunpack.c.l.b16 %v144
    %v331 = vunpack.c.l.b16 %v145
    %v332 = vunpack.c.l.b16 %v146
    %v333 = vunpack.c.l.b16 %v147
    %v334 = vunpack.c.l.b16 %v148
    %v335 = vpack.c.b16 %v256, %v255
    %v336 = vpack.c.b16 %v258, %v257
    %v337 = vpack.c.b16 %v260, %v259
    %v338 = vpack.c.b16 %v262, %v261
    %v339 = vpack.c.b16 %v264, %v263
    %v340 = vpack.c.b16 %v266, %v265
    %v341 = vpack.c.b16 %v268, %v267
    %v342 = vpack.c.b16 %v270, %v269
    %v343 = vpack.c.b16 %v272, %v271
    %v344 = vpack.c.b16 %v274, %v273
    %v345 = vpack.c.b16 %v276, %v275
    %v346 = vpack.c.b16 %v278, %v277
    %v347 = vpack.c.b16 %v280, %v279
    %v348 = vpack.c.b16 %v282, %v281
    %v349 = vpack.c.b16 %v284, %v283
    %v350 = vpack.c.b16 %v286, %v285
    %v351 = vpack.c.b16 %v288, %v287
    %v352 = vpack.c.b16 %v290, %v289
    %v353 = vpack.c.b16 %v292, %v291
    %v354 = vpack.c.b16 %v294, %v293
    %v355 = vpack.c.b16 %v296, %v295
    %v356 = vpack.c.b16 %v298, %v297
    %v357 = vpack.c.b16 %v300, %v299
    %v358 = vpack.c.b16 %v302, %v301
    %v359 = vpack.c.b16 %v304, %v303
    %v360 = vpack.c.b16 %v306, %v305
    %v361 = vpack.c.b16 %v308, %v307
    %v362 = vpack.c.b16 %v310, %v309
    %v363 = vpack.c.b16 %v312, %v311
    %v364 = vpack.c.b16 %v314, %v313
    %v365 = vpack.c.b16 %v316, %v315
    %v366 = vpack.c.b16 %v318, %v317
    %v367 = vpack.c.b16 %v320, %v319
    %v368 = vpack.c.b16 %v322, %v321
    %v369 = vpack.c.b16 %v324, %v323
    %v370 = vpack.c.b16 %v326, %v325
    %v371 = vpack.c.b16 %v328, %v327
    %v372 = vpack.c.b16 %v330, %v329
    %v373 = vpack.c.b16 %v332, %v331
    %v374 = vpack.c.b16 %v334, %v333
    %415 = vmatprep.subr.bf16.mxu0 0
    %416 = vmatpush1.bf16.msra.mxu0 %v342
    %417 = vmatprep.subr.bf16.mxu0 0
    %418 = vmatpush1.bf16.msra.mxu0 %v341
    %419 = vmatprep.subr.bf16.mxu0 0
    %420 = vmatpush1.bf16.msra.mxu0 %v340
    %421 = vmatprep.subr.bf16.mxu0 0
    %422 = vmatpush1.bf16.msra.mxu0 %v339
    %423 = vmatprep.subr.bf16.mxu0 0
    %424 = vmatpush1.bf16.msra.mxu0 %v338
    %425 = vmatprep.subr.bf16.mxu0 0
    %426 = vmatpush1.bf16.msra.mxu0 %v337
    %427 = vmatprep.subr.bf16.mxu0 0
    %428 = vmatpush1.bf16.msra.mxu0 %v336
    %429 = vmatprep.subr.bf16.mxu0 0
    %430 = vmatpush1.bf16.msra.mxu0 %v335
    %431 = vmatprep.subr.bf16.mxu0 0
    %432 = vmatpush2.bf16.msra.mxu0 %v350
    %433 = vmatprep.subr.bf16.mxu0 0
    %434 = vmatpush2.bf16.msra.mxu0 %v349
    %435 = vmatprep.subr.bf16.mxu0 0
    %436 = vmatpush2.bf16.msra.mxu0 %v348
    %437 = vmatprep.subr.bf16.mxu0 0
    %438 = vmatpush2.bf16.msra.mxu0 %v347
    %439 = vmatprep.subr.bf16.mxu0 0
    %440 = vmatpush2.bf16.msra.mxu0 %v346
    %441 = vmatprep.subr.bf16.mxu0 0
    %442 = vmatpush2.bf16.msra.mxu0 %v345
    %443 = vmatprep.subr.bf16.mxu0 0
    %444 = vmatpush2.bf16.msra.mxu0 %v344
    %445 = vmatprep.subr.bf16.mxu0 0
    %446 = vmatpush2.bf16.msra.mxu0 %v343
    %447 = vmatprep.mubr.bf16.mxu0 %v166
    %448 = vmatmul.mubr.bf16.gmra.mxu0 %v165
    %v449 = vpop.f32.mrf.mxu0
    %v450 = vadd.f32 0.0, %v449
    %v451 = vpop.f32.mrf.mxu0
    %v452 = vpop.f32.mrf.mxu0
    %v453 = vadd.f32 0.0, %v452
    %v454 = vpop.f32.mrf.mxu0
    %455 = vdwg.mxu0
    %456 = vmatprep.subr.bf16.mxu0 0
    %457 = vmatpush1.bf16.msra.mxu0 %v358
    %458 = vmatprep.subr.bf16.mxu0 0
    %459 = vmatpush1.bf16.msra.mxu0 %v357
    %460 = vmatprep.subr.bf16.mxu0 0
    %461 = vmatpush1.bf16.msra.mxu0 %v356
    %462 = vmatprep.subr.bf16.mxu0 0
    %463 = vmatpush1.bf16.msra.mxu0 %v355
    %464 = vmatprep.subr.bf16.mxu0 0
    %465 = vmatpush1.bf16.msra.mxu0 %v354
    %466 = vmatprep.subr.bf16.mxu0 0
    %467 = vmatpush1.bf16.msra.mxu0 %v353
    %468 = vmatprep.subr.bf16.mxu0 0
    %469 = vmatpush1.bf16.msra.mxu0 %v352
    %470 = vmatprep.subr.bf16.mxu0 0
    %471 = vmatpush1.bf16.msra.mxu0 %v351
    %472 = vmatprep.subr.bf16.mxu0 0
    %473 = vmatpush2.bf16.msra.mxu0 %v366
    %474 = vmatprep.subr.bf16.mxu0 0
    %475 = vmatpush2.bf16.msra.mxu0 %v365
    %476 = vmatprep.subr.bf16.mxu0 0
    %477 = vmatpush2.bf16.msra.mxu0 %v364
    %478 = vmatprep.subr.bf16.mxu0 0
    %479 = vmatpush2.bf16.msra.mxu0 %v363
    %480 = vmatprep.subr.bf16.mxu0 0
    %481 = vmatpush2.bf16.msra.mxu0 %v362
    %482 = vmatprep.subr.bf16.mxu0 0
    %483 = vmatpush2.bf16.msra.mxu0 %v361
    %484 = vmatprep.subr.bf16.mxu0 0
    %485 = vmatpush2.bf16.msra.mxu0 %v360
    %486 = vmatprep.subr.bf16.mxu0 0
    %487 = vmatpush2.bf16.msra.mxu0 %v359
    %488 = vmatprep.mubr.bf16.mxu0 %v168
    %489 = vmatmul.mubr.bf16.gmra.mxu0 %v167
    %v490 = vpop.f32.mrf.mxu0
    %v491 = vadd.f32 %v450, %v490
    %v492 = vpop.f32.mrf.mxu0
    %v493 = vpop.f32.mrf.mxu0
    %v494 = vadd.f32 %v453, %v493
    %v495 = vpop.f32.mrf.mxu0
    %496 = vdwg.mxu0
    %497 = vmatprep.subr.bf16.mxu0 0
    %498 = vmatpush1.bf16.msra.mxu0 %v374
    %499 = vmatprep.subr.bf16.mxu0 0
    %500 = vmatpush1.bf16.msra.mxu0 %v373
    %501 = vmatprep.subr.bf16.mxu0 0
    %502 = vmatpush1.bf16.msra.mxu0 %v372
    %503 = vmatprep.subr.bf16.mxu0 0
    %504 = vmatpush1.bf16.msra.mxu0 %v371
    %505 = vmatprep.subr.bf16.mxu0 0
    %506 = vmatpush1.bf16.msra.mxu0 %v370
    %507 = vmatprep.subr.bf16.mxu0 0
    %508 = vmatpush1.bf16.msra.mxu0 %v369
    %509 = vmatprep.subr.bf16.mxu0 0
    %510 = vmatpush1.bf16.msra.mxu0 %v368
    %511 = vmatprep.subr.bf16.mxu0 0
    %512 = vmatpush1.bf16.msra.mxu0 %v367
    %513 = vmatprep.subr.bf16.mxu0 0
    %514 = vmatpush2.bf16.msra.mxu0 0
    %515 = vmatprep.subr.bf16.mxu0 0
    %516 = vmatpush2.bf16.msra.mxu0 0
    %517 = vmatprep.subr.bf16.mxu0 0
    %518 = vmatpush2.bf16.msra.mxu0 0
    %519 = vmatprep.subr.bf16.mxu0 0
    %520 = vmatpush2.bf16.msra.mxu0 0
    %521 = vmatprep.subr.bf16.mxu0 0
    %522 = vmatpush2.bf16.msra.mxu0 0
    %523 = vmatprep.subr.bf16.mxu0 0
    %524 = vmatpush2.bf16.msra.mxu0 0
    %525 = vmatprep.subr.bf16.mxu0 0
    %526 = vmatpush2.bf16.msra.mxu0 0
    %527 = vmatprep.subr.bf16.mxu0 0
    %528 = vmatpush2.bf16.msra.mxu0 0
    %529 = vmatprep.mubr.bf16.mxu0 0
    %530 = vmatmul.mubr.bf16.gmra.mxu0 %v169
    %v531 = vpop.f32.mrf.mxu0
    %v532 = vadd.f32 %v491, %v531
    %v533 = vpop.f32.mrf.mxu0
    %v534 = vpop.f32.mrf.mxu0
    %v535 = vadd.f32 %v494, %v534
    %v536 = vpop.f32.mrf.mxu0
    %537 = vdwg.mxu0
    %v538 = vadd.f32 %v61, %v532
    %v539 = vadd.f32 %v62, %v535
    %540 = vst [vmem:[#allocation8] sm:$0xff] %v538
    %541 = vst [vmem:[#allocation8 + $0x8] sm:$0xff] %v539
    // Predicated region
    $region30: #{tpu_custom_call.1} parent=1 // pred_check
      %p542 = pneg %p55
    $region31: #{tpu_custom_call.1} parent=1 // pred_check_branch
      %544 = sbr.rel (%p542) target = $region33
    $region32: #{tpu_custom_call.1} parent=1 // pred_region
      %v545 = vld [vmem:[#allocation7] sm:$0x1]
      %v546 = vld [vmem:[#allocation7 + $0x1] sm:$0x1]
      %v547 = vld [vmem:[#allocation8] sm:$0xff]
      %v548 = vld [vmem:[#allocation8 + $0x8] sm:$0xff]
      %v549 = vadd.f32 %v547, %v548
      %v550 = vrot.slane %v549, 4
      %v551 = vadd.f32 %v549, %v550
      %v552 = vrot.slane %v551, 2
      %v553 = vadd.f32 %v551, %v552
      %v554 = vrot.slane %v553, 1
      %v555 = vadd.f32 %v553, %v554
      %v556 = vmul.f32 %v555, 0.5
      %v557 = vsub.f32 %v547, %v556
      %v558 = vsub.f32 %v548, %v556
      %v559 = vmul.f32 %v557, %v557
      %v560 = vmul.f32 %v558, %v558
      %v561 = vadd.f32 %v559, %v560
      %v562 = vrot.slane %v561, 4
      %v563 = vadd.f32 %v561, %v562
      %v564 = vrot.slane %v563, 2
      %v565 = vadd.f32 %v563, %v564
      %v566 = vrot.slane %v565, 1
      %v567 = vadd.f32 %v565, %v566
      %v568 = vmul.f32 %v556, %v556
      %v569 = vmul.f32 %v568, 14.0
      %v570 = vsub.f32 %v567, %v569
      %v571 = vmul.f32 %v570, 0.5
      %v572 = vmax.f32 %v571, 0.0
      %v573 = vadd.f32 %v572, 1e-05
      %v574 = vrsqrt.pop %v573
      %v575 = vlaneseq
      %v576 = vshrl.u32 %v575, 7
      %v577 = vsub.s32 0, %v576
      %v578 = vrot.slane %v545, %v577
      %v579 = vmul.f32 %v578, %v557
      %v580 = vmul.f32 %v578, %v558
      %v581 = vmul.f32 %v579, %v574
      %v582 = vmul.f32 %v580, %v574
      %v583 = vlaneseq
      %v584 = vshrl.u32 %v583, 7
      %v585 = vsub.s32 0, %v584
      %v586 = vrot.slane %v546, %v585
      %v587 = vadd.f32 %v581, %v586
      %v588 = vadd.f32 %v582, %v586
      %v589 = vmax.f32 %v587, 0.0
      %v590 = vmax.f32 %v588, 0.0
      %591 = vst [vmem:[#allocation8] sm:$0xff] %v589
      %592 = vst [vmem:[#allocation8 + $0x8] sm:$0xff] %v590
    $region33: #{tpu_custom_call.1} parent=1 // pred_fallthru
      _
    // Predicated region
    $region34: #{tpu_custom_call.1} parent=1 // pred_check
      _
    $region35: #{tpu_custom_call.1} parent=1 // pred_check_branch
      %594 = sbr.rel (0) target = $region37
    $region36: #{tpu_custom_call.1} parent=1 // pred_region
      %s596 = ssub.s32 256, 256
      %597 = vsyncadd [#allocation4], %s596
      %s598 = sshll.u32 [#allocation8], 4
      %s599 = int_to_ptr.vmem [resolvable:$true] %s598
      %604 = dma.vmem_to_hbm [thread:$0]  %s599, 256, %s3, [#allocation4], 128, 128, 8
    $region37: #{tpu_custom_call.1} parent=1 // pred_fallthru
      _
    // Predicated region
    $region38: #{tpu_custom_call.1} parent=1 // pred_check
      _
    $region39: #{tpu_custom_call.1} parent=1 // pred_check_branch
      %606 = sbr.rel (0) target = $region41
    $region40: #{tpu_custom_call.1} parent=1 // pred_region
      %607 = dma.done [#allocation4], 256
    $region41: #{tpu_custom_call.1} parent=1 // pred_fallthru
      _
    %608 = vsyncpa [#allocation3], 1
    %609 = vsyncpa [#allocation6], 1
    %610 = vsyncpa [#allocation4], 1

</llo_original>
